<compile_context>
chip_gen: v7x
topology: tpu7x:2x2x1
jax: 0.10.0
libtpu: 0.0.40
codegen_flags: <defaults>
</compile_context>

<pallas_src>
import math
import jax
import jax.numpy as jnp
from jax import lax
from jax.experimental import pallas as pl
from jax.experimental.pallas import tpu as pltpu  # noqa: F401

B, S, H, NH, FF = 2, 8, 32, 4, 64          # batch, seq, hidden, heads, ff_size
DH = H // NH                               # 8
BS = B * S                                 # 16 rows (batch folded into sublanes)
HS = NH * BS                               # 64 head-stacked rows
EPS = 1e-6
NEG = -1e9

# ---- packed bf16 weight buffer: row offsets (all lane-offset 0) -------------
W_QKV = 0                    # (H, 3H) = (32, 96)   fused Q|K|V (Q pre-scaled)
W_MRG = W_QKV + H            # (H, H)  = (32, 32)   linear_merge
W_FF1 = W_MRG + H            # (H, FF) = (32, 64)
W_FF2 = W_FF1 + H            # (FF, H) = (64, 32)
W_ROWS = W_FF2 + FF          # 160
W_LANES = 3 * H              # 96

# ---- packed f32 constant buffer: 8-aligned row offsets (lane-offset 0) ------
C_HMASK = 0                  # (HS, H)  = (64, 32)  per-head lane mask
C_CROSS = C_HMASK + HS       # (HS, BS) = (64, 16)  cross-batch -1e9 bias
C_BQKV = C_CROSS + HS        # (1, 3H)
C_BMRG = C_BQKV + 8          # (1, H)
C_BFF1 = C_BMRG + 8          # (1, FF)
C_BFF2 = C_BFF1 + 8          # (1, H)
C_G1 = C_BFF2 + 8            # (1, H)
C_BE1 = C_G1 + 8             # (1, H)
C_G2 = C_BE1 + 8             # (1, H)
C_BE2 = C_G2 + 8             # (1, H)
C_ROWS = C_BE2 + 8           # 192
C_LANES = 128


def sa_kernel(y_ref, mask_ref, w_ref, c_ref, out_ref):
    f32, bf16 = jnp.float32, jnp.bfloat16
    y = y_ref[...]                                            # (BS, H) f32

    # ---- additive attention bias, head-stacked rows: (HS, BS) --------------
    cross = c_ref[C_CROSS:C_CROSS + HS, 0:BS]                 # packed constant
    key_bias = jnp.where(mask_ref[...] > 0, f32(NEG), f32(0.0))   # (1, BS)
    bias = cross + key_bias                                   # (HS, BS)

    # ---- fused Q/K/V projection (1/sqrt(d_k) pre-folded into Q) ------------
    wqkv = w_ref[W_QKV:W_QKV + H, 0:3 * H]                    # (H, 3H) bf16
    qkv = jnp.dot(y.astype(bf16), wqkv, preferred_element_type=f32)
    qkv = qkv + c_ref[C_BQKV:C_BQKV + 1, 0:3 * H]             # (BS, 3H)
    q = qkv[:, 0:H]
    k = qkv[:, H:2 * H]
    v = qkv[:, 2 * H:3 * H]

    # ---- head-stacked attention: heads live on the sublane axis ------------
    hmask = c_ref[C_HMASK:C_HMASK + HS, 0:H]                  # (HS, H) 0/1
    q4 = jnp.concatenate([q, q, q, q], axis=0) * hmask        # (HS, H)
    kT = k.T                                                  # (H, BS) f32
    s = jnp.dot(q4.astype(bf16), kT.astype(bf16),
                preferred_element_type=f32) + bias            # (HS, BS)
    s_max = jnp.max(s, axis=-1, keepdims=True)
    e = jnp.exp(s - s_max)
    p = e * pl.reciprocal(jnp.sum(e, axis=-1, keepdims=True), approx=True)

    ov = jnp.dot(p.astype(bf16), v.astype(bf16),
                 preferred_element_type=f32) * hmask          # (HS, H)
    # merge heads: 3 sublane-aligned adds (no lane-axis concatenation)
    o = ov[0:BS] + ov[BS:2 * BS] + ov[2 * BS:3 * BS] + ov[3 * BS:4 * BS]

    wm = w_ref[W_MRG:W_MRG + H, 0:H]
    att = jnp.dot(o.astype(bf16), wm, preferred_element_type=f32)
    att = att + c_ref[C_BMRG:C_BMRG + 1, 0:H]                 # (BS, H)

    def layer_norm(x, g_off, b_off):
        g = c_ref[g_off:g_off + 1, 0:H]
        b = c_ref[b_off:b_off + 1, 0:H]
        mu = jnp.mean(x, axis=-1, keepdims=True)
        xc = x - mu
        var = jnp.mean(xc * xc, axis=-1, keepdims=True)
        return g * (xc * lax.rsqrt(var + EPS)) + b

    # TODO(synk): dropout layers are treated as identity (inference mode).
    y1 = layer_norm(y + att, C_G1, C_BE1)

    # ---- FFN (Linear -> ReLU -> Linear) -------------------------------------
    w1 = w_ref[W_FF1:W_FF1 + H, 0:FF]
    w2 = w_ref[W_FF2:W_FF2 + FF, 0:H]
    hdn = jnp.maximum(
        jnp.dot(y1.astype(bf16), w1, preferred_element_type=f32)
        + c_ref[C_BFF1:C_BFF1 + 1, 0:FF], 0.0)
    ffn = (jnp.dot(hdn.astype(bf16), w2, preferred_element_type=f32)
           + c_ref[C_BFF2:C_BFF2 + 1, 0:H])

    out_ref[...] = layer_norm(y1 + ffn, C_G2, C_BE2)          # (BS, H)


def pack_params(p):
    """One-time packing: fuse QKV, fold 1/sqrt(d_k), build 2 contiguous buffers."""
    scale = jnp.float32(1.0 / math.sqrt(DH))
    wqkv = jnp.concatenate([p["wq"] * scale, p["wk"], p["wv"]], axis=1)  # (H,3H)
    bqkv = jnp.concatenate([p["bq"] * scale, p["bk"], p["bv"]], axis=1)  # (1,3H)

    w = jnp.zeros((W_ROWS, W_LANES), jnp.float32)
    w = w.at[W_QKV:W_QKV + H, 0:3 * H].set(wqkv)
    w = w.at[W_MRG:W_MRG + H, 0:H].set(p["wm"])
    w = w.at[W_FF1:W_FF1 + H, 0:FF].set(p["w1"])
    w = w.at[W_FF2:W_FF2 + FF, 0:H].set(p["w2"])
    w = w.astype(jnp.bfloat16)

    # per-head lane mask (head h owns lanes [h*DH, (h+1)*DH)), head-stacked rows
    head_of_row = jnp.arange(HS) // BS
    head_of_lane = jnp.arange(H) // DH
    hmask = (head_of_row[:, None] == head_of_lane[None, :]).astype(jnp.float32)

    # cross-batch -1e9 bias (block-diagonal in the folded-batch row space)
    qb = jnp.arange(BS) // S
    cross16 = jnp.where(qb[:, None] != qb[None, :], NEG, 0.0).astype(jnp.float32)
    cross = jnp.tile(cross16, (NH, 1))                        # (HS, BS)

    c = jnp.zeros((C_ROWS, C_LANES), jnp.float32)
    c = c.at[C_HMASK:C_HMASK + HS, 0:H].set(hmask)
    c = c.at[C_CROSS:C_CROSS + HS, 0:BS].set(cross)
    c = c.at[C_BQKV, 0:3 * H].set(bqkv[0])
    c = c.at[C_BMRG, 0:H].set(p["bm"][0])
    c = c.at[C_BFF1, 0:FF].set(p["b1"][0])
    c = c.at[C_BFF2, 0:H].set(p["b2"][0])
    c = c.at[C_G1, 0:H].set(p["g1"][0])
    c = c.at[C_BE1, 0:H].set(p["be1"][0])
    c = c.at[C_G2, 0:H].set(p["g2"][0])
    c = c.at[C_BE2, 0:H].set(p["be2"][0])
    return {"w": w, "c": c}


def sa_forward(y, y_mask, packed):
    # Layout plumbing only: fold batch into rows, flatten mask.
    y2d = y.reshape(BS, H).astype(jnp.float32)
    mask_flat = y_mask.reshape(1, BS).astype(jnp.int32)
    out = pl.pallas_call(
        sa_kernel,
        out_shape=jax.ShapeDtypeStruct((BS, H), jnp.float32),
    )(y2d, mask_flat, packed["w"], packed["c"])
    return out.reshape(B, S, H)


# ---------------- pure-JAX f32 reference (same math, for validation) --------
def sa_reference(y, y_mask, p):
    def lin(x, w, b):
        return x @ w + b[0]

    def ln(x, g, b):
        mu = jnp.mean(x, axis=-1, keepdims=True)
        var = jnp.mean((x - mu) ** 2, axis=-1, keepdims=True)
        return g[0] * (x - mu) / jnp.sqrt(var + EPS) + b[0]

    q = lin(y, p["wq"], p["bq"]).reshape(B, S, NH, DH).transpose(0, 2, 1, 3)
    k = lin(y, p["wk"], p["bk"]).reshape(B, S, NH, DH).transpose(0, 2, 1, 3)
    v = lin(y, p["wv"], p["bv"]).reshape(B, S, NH, DH).transpose(0, 2, 1, 3)
    s = jnp.einsum("bhqd,bhkd->bhqk", q, k) / math.sqrt(DH)
    s = jnp.where(y_mask[:, :, :, :] > 0, -1e9, s)
    a = jax.nn.softmax(s, axis=-1)
    att = jnp.einsum("bhqk,bhkd->bhqd", a, v).transpose(0, 2, 1, 3).reshape(B, S, H)
    att = lin(att, p["wm"], p["bm"])
    y1 = ln(y + att, p["g1"], p["be1"])
    f = lin(jnp.maximum(lin(y1, p["w1"], p["b1"]), 0.0), p["w2"], p["b2"])
    return ln(y1 + f, p["g2"], p["be2"])


if __name__ == "__main__":
    key = jax.random.PRNGKey(0)
    ks = jax.random.split(key, 16)

    def w(k, shape, scale):
        return (scale * jax.random.normal(k, shape)).astype(jnp.float32)

    params = {
        "wq": w(ks[0], (H, H), 0.1), "bq": w(ks[1], (1, H), 0.02),
        "wk": w(ks[2], (H, H), 0.1), "bk": w(ks[3], (1, H), 0.02),
        "wv": w(ks[4], (H, H), 0.1), "bv": w(ks[5], (1, H), 0.02),
        "wm": w(ks[6], (H, H), 0.1), "bm": w(ks[7], (1, H), 0.02),
        "w1": w(ks[8], (H, FF), 0.1), "b1": w(ks[9], (1, FF), 0.02),
        "w2": w(ks[10], (FF, H), 0.1), "b2": w(ks[11], (1, H), 0.02),
        "g1": jnp.ones((1, H), jnp.float32), "be1": jnp.zeros((1, H), jnp.float32),
        "g2": jnp.ones((1, H), jnp.float32), "be2": jnp.zeros((1, H), jnp.float32),
    }

    y = w(ks[12], (B, S, H), 1.0)
    # mask: last 2 key positions masked for batch 1, nothing masked for batch 0
    mask = jnp.zeros((B, 1, 1, S), jnp.int32).at[1, 0, 0, S - 2:].set(1)

    packed = pack_params(params)
    out = sa_forward(y, mask, packed)
    out = jax.block_until_ready(out)

    ref = sa_reference(y, mask, params)
    if not jnp.allclose(out, ref, atol=1e-2, rtol=1e-2):
        raise AssertionError("Pallas SA kernel does not match reference")
    print("KERNEL_OK")
</pallas_src>

<mosaic_0001>
module attributes {stable_mosaic.version = 11 : i64} {
  func.func @sa_kernel(%arg0: memref<16x32xf32, #tpu.memory_space<vmem>>, %arg1: memref<1x16xi32, #tpu.memory_space<vmem>>, %arg2: memref<160x96xbf16, #tpu.memory_space<vmem>>, %arg3: memref<192x128xf32, #tpu.memory_space<vmem>>, %arg4: memref<16x32xf32, #tpu.memory_space<vmem>>) attributes {dimension_semantics = [], scalar_prefetch = 0 : i64, scratch_operands = 0 : i64, tpu.core_type = #tpu.core_type<tc>} {
    %c0 = arith.constant 0 : index
    %c0_0 = arith.constant 0 : index
    %0 = vector.load %arg0[%c0, %c0_0] : memref<16x32xf32, #tpu.memory_space<vmem>>, vector<16x32xf32>
    %c64 = arith.constant 64 : index
    %c0_1 = arith.constant 0 : index
    %1 = vector.load %arg3[%c64, %c0_1] : memref<192x128xf32, #tpu.memory_space<vmem>>, vector<64x16xf32>
    %c0_2 = arith.constant 0 : index
    %c0_3 = arith.constant 0 : index
    %2 = vector.load %arg1[%c0_2, %c0_3] : memref<1x16xi32, #tpu.memory_space<vmem>>, vector<1x16xi32>
    %c0_i32 = arith.constant 0 : i32
    %3 = vector.broadcast %c0_i32 : i32 to vector<1x16xi32>
    %4 = arith.cmpi sgt, %2, %3 : vector<1x16xi32>
    %cst = arith.constant -1.000000e+09 : f32
    %cst_4 = arith.constant 0.000000e+00 : f32
    %5 = vector.broadcast %cst : f32 to vector<1x16xf32>
    %6 = vector.broadcast %cst_4 : f32 to vector<1x16xf32>
    %7 = arith.select %4, %5, %6 : vector<1x16xi1>, vector<1x16xf32>
    %8 = vector.broadcast %7 : vector<1x16xf32> to vector<64x16xf32>
    %9 = arith.addf %1, %8 : vector<64x16xf32>
    %c0_5 = arith.constant 0 : index
    %c0_6 = arith.constant 0 : index
    %10 = vector.load %arg2[%c0_5, %c0_6] : memref<160x96xbf16, #tpu.memory_space<vmem>>, vector<32x96xbf16>
    %11 = arith.truncf %0 : vector<16x32xf32> to vector<16x32xbf16>
    %cst_7 = arith.constant dense<0.000000e+00> : vector<16x96xf32>
    %12 = tpu.matmul %11, %10, %cst_7 {dimension_numbers = #tpu.dot_dimension_numbers<[1], [0], [0], [1], [0, 0, 1, 1], [], []>} : vector<16x32xbf16>, vector<32x96xbf16>, vector<16x96xf32> -> vector<16x96xf32>
    %c128 = arith.constant 128 : index
    %c0_8 = arith.constant 0 : index
    %13 = vector.load %arg3[%c128, %c0_8] : memref<192x128xf32, #tpu.memory_space<vmem>>, vector<1x96xf32>
    %14 = vector.broadcast %13 : vector<1x96xf32> to vector<16x96xf32>
    %15 = arith.addf %12, %14 : vector<16x96xf32>
    %16 = vector.extract_strided_slice %15 {offsets = [0, 0], sizes = [16, 32], strides = [1, 1]} : vector<16x96xf32> to vector<16x32xf32>
    %17 = vector.extract_strided_slice %15 {offsets = [0, 32], sizes = [16, 32], strides = [1, 1]} : vector<16x96xf32> to vector<16x32xf32>
    %18 = vector.extract_strided_slice %15 {offsets = [0, 64], sizes = [16, 32], strides = [1, 1]} : vector<16x96xf32> to vector<16x32xf32>
    %c0_9 = arith.constant 0 : index
    %c0_10 = arith.constant 0 : index
    %19 = vector.load %arg3[%c0_9, %c0_10] : memref<192x128xf32, #tpu.memory_space<vmem>>, vector<64x32xf32>
    %20 = tpu.concatenate %16, %16, %16, %16 in 0 : vector<16x32xf32>, vector<16x32xf32>, vector<16x32xf32>, vector<16x32xf32> -> vector<64x32xf32>
    %21 = arith.mulf %20, %19 : vector<64x32xf32>
    %22 = tpu.transpose %17, [1, 0] : vector<16x32xf32> -> vector<32x16xf32>
    %23 = arith.truncf %21 : vector<64x32xf32> to vector<64x32xbf16>
    %24 = arith.truncf %22 : vector<32x16xf32> to vector<32x16xbf16>
    %cst_11 = arith.constant dense<0.000000e+00> : vector<64x16xf32>
    %25 = tpu.matmul %23, %24, %cst_11 {dimension_numbers = #tpu.dot_dimension_numbers<[1], [0], [0], [1], [0, 0, 1, 1], [], []>} : vector<64x32xbf16>, vector<32x16xbf16>, vector<64x16xf32> -> vector<64x16xf32>
    %26 = arith.addf %25, %9 : vector<64x16xf32>
    %cst_12 = arith.constant dense<0xFF800000> : vector<64xf32>
    %27 = vector.multi_reduction <maximumf>, %26, %cst_12 [1] : vector<64x16xf32> to vector<64xf32>
    %28 = vector.shape_cast %27 : vector<64xf32> to vector<64x1xf32>
    %29 = vector.broadcast %28 : vector<64x1xf32> to vector<64x16xf32>
    %30 = arith.subf %26, %29 : vector<64x16xf32>
    %31 = math.exp %30 : vector<64x16xf32>
    %cst_13 = arith.constant dense<0.000000e+00> : vector<64xf32>
    %32 = vector.multi_reduction <add>, %31, %cst_13 [1] : vector<64x16xf32> to vector<64xf32>
    %33 = vector.shape_cast %32 : vector<64xf32> to vector<64x1xf32>
    %34 = tpu.reciprocal %33 {approx = true} : vector<64x1xf32> -> vector<64x1xf32>
    %35 = vector.broadcast %34 : vector<64x1xf32> to vector<64x16xf32>
    %36 = arith.mulf %31, %35 : vector<64x16xf32>
    %37 = arith.truncf %36 : vector<64x16xf32> to vector<64x16xbf16>
    %38 = arith.truncf %18 : vector<16x32xf32> to vector<16x32xbf16>
    %cst_14 = arith.constant dense<0.000000e+00> : vector<64x32xf32>
    %39 = tpu.matmul %37, %38, %cst_14 {dimension_numbers = #tpu.dot_dimension_numbers<[1], [0], [0], [1], [0, 0, 1, 1], [], []>} : vector<64x16xbf16>, vector<16x32xbf16>, vector<64x32xf32> -> vector<64x32xf32>
    %40 = arith.mulf %39, %19 : vector<64x32xf32>
    %41 = vector.extract_strided_slice %40 {offsets = [0, 0], sizes = [16, 32], strides = [1, 1]} : vector<64x32xf32> to vector<16x32xf32>
    %42 = vector.extract_strided_slice %40 {offsets = [16, 0], sizes = [16, 32], strides = [1, 1]} : vector<64x32xf32> to vector<16x32xf32>
    %43 = arith.addf %41, %42 : vector<16x32xf32>
    %44 = vector.extract_strided_slice %40 {offsets = [32, 0], sizes = [16, 32], strides = [1, 1]} : vector<64x32xf32> to vector<16x32xf32>
    %45 = arith.addf %43, %44 : vector<16x32xf32>
    %46 = vector.extract_strided_slice %40 {offsets = [48, 0], sizes = [16, 32], strides = [1, 1]} : vector<64x32xf32> to vector<16x32xf32>
    %47 = arith.addf %45, %46 : vector<16x32xf32>
    %c32 = arith.constant 32 : index
    %c0_15 = arith.constant 0 : index
    %48 = vector.load %arg2[%c32, %c0_15] : memref<160x96xbf16, #tpu.memory_space<vmem>>, vector<32x32xbf16>
    %49 = arith.truncf %47 : vector<16x32xf32> to vector<16x32xbf16>
    %cst_16 = arith.constant dense<0.000000e+00> : vector<16x32xf32>
    %50 = tpu.matmul %49, %48, %cst_16 {dimension_numbers = #tpu.dot_dimension_numbers<[1], [0], [0], [1], [0, 0, 1, 1], [], []>} : vector<16x32xbf16>, vector<32x32xbf16>, vector<16x32xf32> -> vector<16x32xf32>
    %c136 = arith.constant 136 : index
    %c0_17 = arith.constant 0 : index
    %51 = vector.load %arg3[%c136, %c0_17] : memref<192x128xf32, #tpu.memory_space<vmem>>, vector<1x32xf32>
    %52 = vector.broadcast %51 : vector<1x32xf32> to vector<16x32xf32>
    %53 = arith.addf %50, %52 : vector<16x32xf32>
    %54 = arith.addf %0, %53 : vector<16x32xf32>
    %c160 = arith.constant 160 : index
    %c0_18 = arith.constant 0 : index
    %55 = vector.load %arg3[%c160, %c0_18] : memref<192x128xf32, #tpu.memory_space<vmem>>, vector<1x32xf32>
    %c168 = arith.constant 168 : index
    %c0_19 = arith.constant 0 : index
    %56 = vector.load %arg3[%c168, %c0_19] : memref<192x128xf32, #tpu.memory_space<vmem>>, vector<1x32xf32>
    %cst_20 = arith.constant dense<0.000000e+00> : vector<16xf32>
    %57 = vector.multi_reduction <add>, %54, %cst_20 [1] : vector<16x32xf32> to vector<16xf32>
    %58 = vector.shape_cast %57 : vector<16xf32> to vector<16x1xf32>
    %cst_21 = arith.constant 3.200000e+01 : f32
    %59 = vector.broadcast %cst_21 : f32 to vector<16x1xf32>
    %60 = arith.divf %58, %59 : vector<16x1xf32>
    %61 = vector.broadcast %60 : vector<16x1xf32> to vector<16x32xf32>
    %62 = arith.subf %54, %61 : vector<16x32xf32>
    %63 = arith.mulf %62, %62 : vector<16x32xf32>
    %cst_22 = arith.constant dense<0.000000e+00> : vector<16xf32>
    %64 = vector.multi_reduction <add>, %63, %cst_22 [1] : vector<16x32xf32> to vector<16xf32>
    %65 = vector.shape_cast %64 : vector<16xf32> to vector<16x1xf32>
    %cst_23 = arith.constant 3.200000e+01 : f32
    %66 = vector.broadcast %cst_23 : f32 to vector<16x1xf32>
    %67 = arith.divf %65, %66 : vector<16x1xf32>
    %cst_24 = arith.constant 9.99999997E-7 : f32
    %68 = vector.broadcast %cst_24 : f32 to vector<16x1xf32>
    %69 = arith.addf %67, %68 : vector<16x1xf32>
    %70 = math.rsqrt %69 : vector<16x1xf32>
    %71 = vector.broadcast %70 : vector<16x1xf32> to vector<16x32xf32>
    %72 = arith.mulf %62, %71 : vector<16x32xf32>
    %73 = vector.broadcast %55 : vector<1x32xf32> to vector<16x32xf32>
    %74 = arith.mulf %73, %72 : vector<16x32xf32>
    %75 = vector.broadcast %56 : vector<1x32xf32> to vector<16x32xf32>
    %76 = arith.addf %74, %75 : vector<16x32xf32>
    %c64_25 = arith.constant 64 : index
    %c0_26 = arith.constant 0 : index
    %77 = vector.load %arg2[%c64_25, %c0_26] : memref<160x96xbf16, #tpu.memory_space<vmem>>, vector<32x64xbf16>
    %c96 = arith.constant 96 : index
    %c0_27 = arith.constant 0 : index
    %78 = vector.load %arg2[%c96, %c0_27] : memref<160x96xbf16, #tpu.memory_space<vmem>>, vector<64x32xbf16>
    %79 = arith.truncf %76 : vector<16x32xf32> to vector<16x32xbf16>
    %cst_28 = arith.constant dense<0.000000e+00> : vector<16x64xf32>
    %80 = tpu.matmul %79, %77, %cst_28 {dimension_numbers = #tpu.dot_dimension_numbers<[1], [0], [0], [1], [0, 0, 1, 1], [], []>} : vector<16x32xbf16>, vector<32x64xbf16>, vector<16x64xf32> -> vector<16x64xf32>
    %c144 = arith.constant 144 : index
    %c0_29 = arith.constant 0 : index
    %81 = vector.load %arg3[%c144, %c0_29] : memref<192x128xf32, #tpu.memory_space<vmem>>, vector<1x64xf32>
    %82 = vector.broadcast %81 : vector<1x64xf32> to vector<16x64xf32>
    %83 = arith.addf %80, %82 : vector<16x64xf32>
    %cst_30 = arith.constant 0.000000e+00 : f32
    %84 = vector.broadcast %cst_30 : f32 to vector<16x64xf32>
    %85 = arith.maximumf %83, %84 : vector<16x64xf32>
    %86 = arith.truncf %85 : vector<16x64xf32> to vector<16x64xbf16>
    %cst_31 = arith.constant dense<0.000000e+00> : vector<16x32xf32>
    %87 = tpu.matmul %86, %78, %cst_31 {dimension_numbers = #tpu.dot_dimension_numbers<[1], [0], [0], [1], [0, 0, 1, 1], [], []>} : vector<16x64xbf16>, vector<64x32xbf16>, vector<16x32xf32> -> vector<16x32xf32>
    %c152 = arith.constant 152 : index
    %c0_32 = arith.constant 0 : index
    %88 = vector.load %arg3[%c152, %c0_32] : memref<192x128xf32, #tpu.memory_space<vmem>>, vector<1x32xf32>
    %89 = vector.broadcast %88 : vector<1x32xf32> to vector<16x32xf32>
    %90 = arith.addf %87, %89 : vector<16x32xf32>
    %91 = arith.addf %76, %90 : vector<16x32xf32>
    %c176 = arith.constant 176 : index
    %c0_33 = arith.constant 0 : index
    %92 = vector.load %arg3[%c176, %c0_33] : memref<192x128xf32, #tpu.memory_space<vmem>>, vector<1x32xf32>
    %c184 = arith.constant 184 : index
    %c0_34 = arith.constant 0 : index
    %93 = vector.load %arg3[%c184, %c0_34] : memref<192x128xf32, #tpu.memory_space<vmem>>, vector<1x32xf32>
    %cst_35 = arith.constant dense<0.000000e+00> : vector<16xf32>
    %94 = vector.multi_reduction <add>, %91, %cst_35 [1] : vector<16x32xf32> to vector<16xf32>
    %95 = vector.shape_cast %94 : vector<16xf32> to vector<16x1xf32>
    %cst_36 = arith.constant 3.200000e+01 : f32
    %96 = vector.broadcast %cst_36 : f32 to vector<16x1xf32>
    %97 = arith.divf %95, %96 : vector<16x1xf32>
    %98 = vector.broadcast %97 : vector<16x1xf32> to vector<16x32xf32>
    %99 = arith.subf %91, %98 : vector<16x32xf32>
    %100 = arith.mulf %99, %99 : vector<16x32xf32>
    %cst_37 = arith.constant dense<0.000000e+00> : vector<16xf32>
    %101 = vector.multi_reduction <add>, %100, %cst_37 [1] : vector<16x32xf32> to vector<16xf32>
    %102 = vector.shape_cast %101 : vector<16xf32> to vector<16x1xf32>
    %cst_38 = arith.constant 3.200000e+01 : f32
    %103 = vector.broadcast %cst_38 : f32 to vector<16x1xf32>
    %104 = arith.divf %102, %103 : vector<16x1xf32>
    %cst_39 = arith.constant 9.99999997E-7 : f32
    %105 = vector.broadcast %cst_39 : f32 to vector<16x1xf32>
    %106 = arith.addf %104, %105 : vector<16x1xf32>
    %107 = math.rsqrt %106 : vector<16x1xf32>
    %108 = vector.broadcast %107 : vector<16x1xf32> to vector<16x32xf32>
    %109 = arith.mulf %99, %108 : vector<16x32xf32>
    %110 = vector.broadcast %92 : vector<1x32xf32> to vector<16x32xf32>
    %111 = arith.mulf %110, %109 : vector<16x32xf32>
    %112 = vector.broadcast %93 : vector<1x32xf32> to vector<16x32xf32>
    %113 = arith.addf %111, %112 : vector<16x32xf32>
    %c0_40 = arith.constant 0 : index
    %c0_41 = arith.constant 0 : index
    %114 = vector.load %arg4[%c0_40, %c0_41] : memref<16x32xf32, #tpu.memory_space<vmem>>, vector<16x32xf32>
    tpu.vector_store %arg4[%c0_40, %c0_41], %113 {strides = array<i32>} : memref<16x32xf32, #tpu.memory_space<vmem>>, vector<16x32xf32>,
    return
  }
}

</mosaic_0001>

<llo_original>
// kernel: tpu_custom_call.1
$region0: #{tpu_custom_call.1}
  #allocation0 [shape = 'u32[]', space=smem, size = 0x4, offset = 0x4, fixed_abs, tag = 'smem constant byte address 0x4 - core index']
  #allocation1 [shape = 'u32[144,128]{1,0:T(1,128)}', space=vmem, size = 0x12000, scoped, tag = 'internal scratch']
  %s0 = inlined_call_operand.hbm [shape: f32[16,32], index: 0, kind: input, shape index: {}]
  %s1 = inlined_call_operand.vmem [shape: s32[1,16], index: 1, kind: input, shape index: {}]
  %s2 = inlined_call_operand.hbm [shape: bf16[160,96], index: 2, kind: input, shape index: {}]
  %s3 = inlined_call_operand.hbm [shape: f32[192,128], index: 3, kind: input, shape index: {}]
  %s4 = inlined_call_operand.hbm [shape: f32[16,32], index: 4, kind: output, shape index: {}]
  %s5 = sld [smem:[#allocation0]]
  $region38: #{tpu_custom_call.1} parent=0
    _
  %s7 = ssub.s32 1, %s5
  %s8 = scalar_select 0, %s7, %s5
  $region1: #{tpu_custom_call.1} parent=0
    #allocation2 [shape = 'u8[8192]{0}', space=vmem, size = 0x2000, scoped, tag = 'input window, operand 0, single buffered']
    #allocation3 [shape = 's32[1]{0}', space=sflag, size = 0x4, scoped, tag = 'scoped memory for tpu_custom_call.1']
    #allocation4 [shape = 's32[1]{0}', space=sflag, size = 0x4, scoped, tag = 'scoped memory for tpu_custom_call.1']
    #allocation5 [shape = 'u8[40960]{0}', space=vmem, size = 0xa000, scoped, tag = 'input window, operand 2, single buffered']
    #allocation6 [shape = 's32[1]{0}', space=sflag, size = 0x4, scoped, tag = 'scoped memory for tpu_custom_call.1']
    #allocation7 [shape = 'u8[98304]{0}', space=vmem, size = 0x18000, scoped, tag = 'input window, operand 3, single buffered']
    #allocation8 [shape = 'u8[8192]{0}', space=vmem, size = 0x2000, scoped, tag = 'output window, operand 0, single buffered']
    %9 = vsyncpa [#allocation3], 0
    %10 = vsyncpa [#allocation6], 0
    %11 = vsyncpa [#allocation4], 0
    // Predicated region
    $region2: #{tpu_custom_call.1} parent=1 // pred_check
      _
    $region3: #{tpu_custom_call.1} parent=1 // pred_check_branch
      %13 = sbr.rel (0) target = $region5
    $region4: #{tpu_custom_call.1} parent=1 // pred_region
      %s15 = ssub.s32 256, 256
      %16 = vsyncadd [#allocation3], %s15
      %s17 = sshll.u32 [#allocation2], 4
      %s18 = int_to_ptr.vmem [resolvable:$true] %s17
      %23 = dma.hbm_to_vmem [thread:$0]  %s0, 256, %s18, [#allocation3], 128, 128, 8
    $region5: #{tpu_custom_call.1} parent=1 // pred_fallthru
      _
    // Predicated region
    $region6: #{tpu_custom_call.1} parent=1 // pred_check
      _
    $region7: #{tpu_custom_call.1} parent=1 // pred_check_branch
      %25 = sbr.rel (0) target = $region9
    $region8: #{tpu_custom_call.1} parent=1 // pred_region
      _
    $region9: #{tpu_custom_call.1} parent=1 // pred_fallthru
      _
    // Predicated region
    $region10: #{tpu_custom_call.1} parent=1 // pred_check
      _
    $region11: #{tpu_custom_call.1} parent=1 // pred_check_branch
      %27 = sbr.rel (0) target = $region13
    $region12: #{tpu_custom_call.1} parent=1 // pred_region
      %s29 = ssub.s32 1280, 1280
      %30 = vsyncadd [#allocation6], %s29
      %s31 = sshll.u32 [#allocation5], 4
      %s32 = int_to_ptr.vmem [resolvable:$true] %s31
      %37 = dma.hbm_to_vmem [thread:$0]  %s2, 1280, %s32, [#allocation6], 64, 64, 4
    $region13: #{tpu_custom_call.1} parent=1 // pred_fallthru
      _
    // Predicated region
    $region14: #{tpu_custom_call.1} parent=1 // pred_check
      _
    $region15: #{tpu_custom_call.1} parent=1 // pred_check_branch
      %39 = sbr.rel (0) target = $region17
    $region16: #{tpu_custom_call.1} parent=1 // pred_region
      %s41 = ssub.s32 3072, 3072
      %42 = vsyncadd [#allocation6], %s41
      %s43 = sshll.u32 [#allocation7], 4
      %s44 = int_to_ptr.vmem [resolvable:$true] %s43
      %49 = dma.hbm_to_vmem [thread:$0]  %s3, 3072, %s44, [#allocation6], 128, 128, 8
    $region17: #{tpu_custom_call.1} parent=1 // pred_fallthru
      _
    // Predicated region
    $region18: #{tpu_custom_call.1} parent=1 // pred_check
      _
    $region19: #{tpu_custom_call.1} parent=1 // pred_check_branch
      %51 = sbr.rel (0) target = $region21
    $region20: #{tpu_custom_call.1} parent=1 // pred_region
      %52 = dma.done [#allocation3], 256
    $region21: #{tpu_custom_call.1} parent=1 // pred_fallthru
      _
    // Predicated region
    $region22: #{tpu_custom_call.1} parent=1 // pred_check
      _
    $region23: #{tpu_custom_call.1} parent=1 // pred_check_branch
      %54 = sbr.rel (0) target = $region25
    $region24: #{tpu_custom_call.1} parent=1 // pred_region
      %55 = dma.done [#allocation6], 1280
    $region25: #{tpu_custom_call.1} parent=1 // pred_fallthru
      _
    // Predicated region
    $region26: #{tpu_custom_call.1} parent=1 // pred_check
      _
    $region27: #{tpu_custom_call.1} parent=1 // pred_check_branch
      %57 = sbr.rel (0) target = $region29
    $region28: #{tpu_custom_call.1} parent=1 // pred_region
      %58 = dma.done [#allocation6], 3072
    $region29: #{tpu_custom_call.1} parent=1 // pred_fallthru
      _
    %v60 = vld [vmem:[#allocation2] sm:$0xff]
    %v61 = vld [vmem:[#allocation2 + $0x8] sm:$0xff]
    %v62 = vld [vmem:[#allocation7 + $0x40] sm:$0xff]
    %v63 = vld [vmem:[#allocation7 + $0x48] sm:$0xff]
    %v64 = vld [vmem:[#allocation7 + $0x50] sm:$0xff]
    %v65 = vld [vmem:[#allocation7 + $0x58] sm:$0xff]
    %v66 = vld [vmem:[#allocation7 + $0x60] sm:$0xff]
    %v67 = vld [vmem:[#allocation7 + $0x68] sm:$0xff]
    %v68 = vld [vmem:[#allocation7 + $0x70] sm:$0xff]
    %v69 = vld [vmem:[#allocation7 + $0x78] sm:$0xff]
    %v70 = vld [vmem:[%s1] sm:$0x1]
    %vm71 = vcmp.gt.s32.totalorder %v70, 0
    %v72 = vsel %vm71, -1e+09, 0.0
    %v74 = vlaneseq
    %v75 = vshrl.u32 %v74, 7
    %v76 = vsub.s32 0, %v75
    %v77 = vrot.slane %v72, %v76
    %v79 = vadd.f32 %v62, %v77
    %v80 = vadd.f32 %v63, %v77
    %v81 = vadd.f32 %v64, %v77
    %v82 = vadd.f32 %v65, %v77
    %v83 = vadd.f32 %v66, %v77
    %v84 = vadd.f32 %v67, %v77
    %v85 = vadd.f32 %v68, %v77
    %v86 = vadd.f32 %v69, %v77
    %v87 = vld [vmem:[#allocation5] sm:$0xf]
    %v88 = vld [vmem:[#allocation5 + $0x4] sm:$0xf]
    %v89 = vld [vmem:[#allocation5 + $0x8] sm:$0xf]
    %v90 = vld [vmem:[#allocation5 + $0xc] sm:$0xf]
    %v91 = vpack.c.bf16 %v61, %v60
    %v92 = vld [vmem:[#allocation7 + $0x80] sm:$0x1]
    %v93 = vlaneseq
    %v94 = vshrl.u32 %v93, 7
    %v95 = vsub.s32 0, %v94
    %v96 = vrot.slane %v92, %v95
    %v101 = vunpack.c.l.b16 %v87
    %v102 = vunpack.c.l.b16 %v88
    %v103 = vunpack.c.l.b16 %v89
    %v104 = vunpack.c.l.b16 %v90
    %v105 = vpack.c.b16 %v102, %v101
    %v106 = vpack.c.b16 %v104, %v103
    %vm109 = vcmask 261120
    %v111 = vsel %vm109, %v91, 0
    %113 = vmatprep.subr.bf16.mxu0 0
    %114 = vmatpush1.bf16.msra.mxu0 %v105
    %115 = vmatprep.subr.bf16.mxu0 0
    %116 = vmatpush1.bf16.msra.mxu0 %v106
    %117 = vmatprep.subr.bf16.mxu0 0
    %118 = vmatpush1.bf16.msra.mxu0 0
    %119 = vmatprep.subr.bf16.mxu0 0
    %120 = vmatpush1.bf16.msra.mxu0 0
    %121 = vmatprep.subr.bf16.mxu0 0
    %122 = vmatpush1.bf16.msra.mxu0 0
    %123 = vmatprep.subr.bf16.mxu0 0
    %124 = vmatpush1.bf16.msra.mxu0 0
    %125 = vmatprep.subr.bf16.mxu0 0
    %126 = vmatpush1.bf16.msra.mxu0 0
    %127 = vmatprep.subr.bf16.mxu0 0
    %128 = vmatpush1.bf16.msra.mxu0 0
    %129 = vmatprep.subr.bf16.mxu0 0
    %130 = vmatpush1.bf16.msra.mxu0 0
    %131 = vmatprep.subr.bf16.mxu0 0
    %132 = vmatpush1.bf16.msra.mxu0 0
    %133 = vmatprep.subr.bf16.mxu0 0
    %134 = vmatpush1.bf16.msra.mxu0 0
    %135 = vmatprep.subr.bf16.mxu0 0
    %136 = vmatpush1.bf16.msra.mxu0 0
    %137 = vmatprep.subr.bf16.mxu0 0
    %138 = vmatpush1.bf16.msra.mxu0 0
    %139 = vmatprep.subr.bf16.mxu0 0
    %140 = vmatpush1.bf16.msra.mxu0 0
    %141 = vmatprep.subr.bf16.mxu0 0
    %142 = vmatpush1.bf16.msra.mxu0 0
    %143 = vmatprep.subr.bf16.mxu0 0
    %144 = vmatpush1.bf16.msra.mxu0 0
    %145 = vmatprep.mubr.bf16.mxu0 0
    %146 = vmatmul.mubr.bf16.gmra.mrb[0].mxu0 %v111
    %v147 = vpop.f32.mrb[0].mxu0
    %v148 = vadd.f32 %v96, %v147
    %v149 = vpop.f32.mrb[0].mxu0
    %v150 = vpop.f32.mrb[0].mxu0
    %v151 = vadd.f32 %v96, %v150
    %v152 = vpop.f32.mrb[0].mxu0
    %153 = vdwg.mxu0
    %v154 = vld [vmem:[#allocation7] sm:$0xff]
    %v155 = vld [vmem:[#allocation7 + $0x8] sm:$0xff]
    %v156 = vld [vmem:[#allocation7 + $0x10] sm:$0xff]
    %v157 = vld [vmem:[#allocation7 + $0x18] sm:$0xff]
    %v158 = vld [vmem:[#allocation7 + $0x20] sm:$0xff]
    %v159 = vld [vmem:[#allocation7 + $0x28] sm:$0xff]
    %v160 = vld [vmem:[#allocation7 + $0x30] sm:$0xff]
    %v161 = vld [vmem:[#allocation7 + $0x38] sm:$0xff]
    %v162 = vmul.f32 %v148, %v154
    %v163 = vmul.f32 %v151, %v155
    %v164 = vmul.f32 %v148, %v156
    %v165 = vmul.f32 %v151, %v157
    %v166 = vmul.f32 %v148, %v158
    %v167 = vmul.f32 %v151, %v159
    %v168 = vmul.f32 %v148, %v160
    %v169 = vmul.f32 %v151, %v161
    %172 = vrot.lane.b32.xlu0 %v148, 96
    %v173 = vpop.permute.xlu0 %172
    %174 = vrot.lane.b32.xlu0 %v151, 96
    %v175 = vpop.permute.xlu0 %174
    %178 = vxpose.xlu0.b32.start [1/16] %v173, 128
    %179 = vxpose.xlu0.b32.cont [2/16] %v175, 128
    %180 = vxpose.xlu0.b32.cont [3/16] 0.0, 128
    %181 = vxpose.xlu0.b32.cont [4/16] 0.0, 128
    %182 = vxpose.xlu0.b32.cont [5/16] 0.0, 128
    %183 = vxpose.xlu0.b32.cont [6/16] 0.0, 128
    %184 = vxpose.xlu0.b32.cont [7/16] 0.0, 128
    %185 = vxpose.xlu0.b32.cont [8/16] 0.0, 128
    %186 = vxpose.xlu0.b32.cont [9/16] 0.0, 128
    %187 = vxpose.xlu0.b32.cont [10/16] 0.0, 128
    %188 = vxpose.xlu0.b32.cont [11/16] 0.0, 128
    %189 = vxpose.xlu0.b32.cont [12/16] 0.0, 128
    %190 = vxpose.xlu0.b32.cont [13/16] 0.0, 128
    %191 = vxpose.xlu0.b32.cont [14/16] 0.0, 128
    %192 = vxpose.xlu0.b32.cont [15/16] 0.0, 128
    %193 = vxpose.xlu0.b32.end [16/16] 0.0, 128
    %v194 = vpop.trf.xlu0
    %v195 = vpop.trf.xlu0
    %v196 = vpop.trf.xlu0
    %v197 = vpop.trf.xlu0
    %v198 = vpop.trf.xlu0
    %v199 = vpop.trf.xlu0
    %v200 = vpop.trf.xlu0
    %v201 = vpop.trf.xlu0
    %v202 = vpop.trf.xlu0
    %v203 = vpop.trf.xlu0
    %v204 = vpop.trf.xlu0
    %v205 = vpop.trf.xlu0
    %v206 = vpop.trf.xlu0
    %v207 = vpop.trf.xlu0
    %v208 = vpop.trf.xlu0
    %v209 = vpop.trf.xlu0
    %v210 = vpack.c.bf16 %v163, %v162
    %v211 = vpack.c.bf16 %v165, %v164
    %v212 = vpack.c.bf16 %v167, %v166
    %v213 = vpack.c.bf16 %v169, %v168
    %v214 = vpack.c.bf16 %v195, %v194
    %v215 = vpack.c.bf16 %v197, %v196
    %v217 = vsel %vm109, %v210, 0
    %v220 = vsel %vm109, %v211, 0
    %v223 = vsel %vm109, %v212, 0
    %v226 = vsel %vm109, %v213, 0
    %228 = vmatprep.subr.bf16.mxu0 0
    %229 = vmatpush1.bf16.msra.mxu0 %v214
    %230 = vmatprep.subr.bf16.mxu0 0
    %231 = vmatpush1.bf16.msra.mxu0 %v215
    %232 = vmatprep.subr.bf16.mxu0 0
    %233 = vmatpush1.bf16.msra.mxu0 0
    %234 = vmatprep.subr.bf16.mxu0 0
    %235 = vmatpush1.bf16.msra.mxu0 0
    %236 = vmatprep.subr.bf16.mxu0 0
    %237 = vmatpush1.bf16.msra.mxu0 0
    %238 = vmatprep.subr.bf16.mxu0 0
    %239 = vmatpush1.bf16.msra.mxu0 0
    %240 = vmatprep.subr.bf16.mxu0 0
    %241 = vmatpush1.bf16.msra.mxu0 0
    %242 = vmatprep.subr.bf16.mxu0 0
    %243 = vmatpush1.bf16.msra.mxu0 0
    %244 = vmatprep.subr.bf16.mxu0 0
    %245 = vmatpush1.bf16.msra.mxu0 0
    %246 = vmatprep.subr.bf16.mxu0 0
    %247 = vmatpush1.bf16.msra.mxu0 0
    %248 = vmatprep.subr.bf16.mxu0 0
    %249 = vmatpush1.bf16.msra.mxu0 0
    %250 = vmatprep.subr.bf16.mxu0 0
    %251 = vmatpush1.bf16.msra.mxu0 0
    %252 = vmatprep.subr.bf16.mxu0 0
    %253 = vmatpush1.bf16.msra.mxu0 0
    %254 = vmatprep.subr.bf16.mxu0 0
    %255 = vmatpush1.bf16.msra.mxu0 0
    %256 = vmatprep.subr.bf16.mxu0 0
    %257 = vmatpush1.bf16.msra.mxu0 0
    %258 = vmatprep.subr.bf16.mxu0 0
    %259 = vmatpush1.bf16.msra.mxu0 0
    %260 = vmatprep.mubr.bf16.mxu0 0
    %261 = vmatmul.mubr.bf16.gmra.mrb[0].mxu0 %v217
    %v262 = vpop.f32.mrb[0].mxu0
    %v263 = vadd.f32 %v79, %v262
    %v264 = vpop.f32.mrb[0].mxu0
    %v265 = vpop.f32.mrb[0].mxu0
    %v266 = vadd.f32 %v80, %v265
    %v267 = vpop.f32.mrb[0].mxu0
    %268 = vmatprep.mubr.bf16.mxu0 0
    %269 = vmatmul.mubr.bf16.gmra.mrb[0].mxu0 %v220
    %v270 = vpop.f32.mrb[0].mxu0
    %v271 = vadd.f32 %v81, %v270
    %v272 = vpop.f32.mrb[0].mxu0
    %v273 = vpop.f32.mrb[0].mxu0
    %v274 = vadd.f32 %v82, %v273
    %v275 = vpop.f32.mrb[0].mxu0
    %276 = vmatprep.mubr.bf16.mxu0 0
    %277 = vmatmul.mubr.bf16.gmra.mrb[0].mxu0 %v223
    %v278 = vpop.f32.mrb[0].mxu0
    %v279 = vadd.f32 %v83, %v278
    %v280 = vpop.f32.mrb[0].mxu0
    %v281 = vpop.f32.mrb[0].mxu0
    %v282 = vadd.f32 %v84, %v281
    %v283 = vpop.f32.mrb[0].mxu0
    %284 = vmatprep.mubr.bf16.mxu0 0
    %285 = vmatmul.mubr.bf16.gmra.mrb[0].mxu0 %v226
    %v286 = vpop.f32.mrb[0].mxu0
    %v287 = vadd.f32 %v85, %v286
    %v288 = vpop.f32.mrb[0].mxu0
    %v289 = vpop.f32.mrb[0].mxu0
    %v290 = vadd.f32 %v86, %v289
    %v291 = vpop.f32.mrb[0].mxu0
    %292 = vdwg.mxu0
    %vm293 = vcmask 130048
    %v294 = vsel %vm293, %v263, -inf
    %295 = vmax.xlane.f32.xlu0 %v294
    %v296 = vpop.xlane.xlu0 %295
    %v297 = vsel %vm293, %v266, -inf
    %298 = vmax.xlane.f32.xlu0 %v297
    %v299 = vpop.xlane.xlu0 %298
    %v300 = vsel %vm293, %v271, -inf
    %301 = vmax.xlane.f32.xlu0 %v300
    %v302 = vpop.xlane.xlu0 %301
    %v303 = vsel %vm293, %v274, -inf
    %304 = vmax.xlane.f32.xlu0 %v303
    %v305 = vpop.xlane.xlu0 %304
    %v306 = vsel %vm293, %v279, -inf
    %307 = vmax.xlane.f32.xlu0 %v306
    %v308 = vpop.xlane.xlu0 %307
    %v309 = vsel %vm293, %v282, -inf
    %310 = vmax.xlane.f32.xlu0 %v309
    %v311 = vpop.xlane.xlu0 %310
    %v312 = vsel %vm293, %v287, -inf
    %313 = vmax.xlane.f32.xlu0 %v312
    %v314 = vpop.xlane.xlu0 %313
    %v315 = vsel %vm293, %v290, -inf
    %316 = vmax.xlane.f32.xlu0 %v315
    %v317 = vpop.xlane.xlu0 %316
    %v318 = vsub.f32 %v263, %v296
    %v319 = vsub.f32 %v266, %v299
    %v320 = vsub.f32 %v271, %v302
    %v321 = vsub.f32 %v274, %v305
    %v322 = vsub.f32 %v279, %v308
    %v323 = vsub.f32 %v282, %v311
    %v324 = vsub.f32 %v287, %v314
    %v325 = vsub.f32 %v290, %v317
    %v326 = vmul.f32 %v318, 1.442695
    %v327 = vpow.pop %v326
    %v328 = vmul.f32 %v319, 1.442695
    %v329 = vpow.pop %v328
    %v330 = vmul.f32 %v320, 1.442695
    %v331 = vpow.pop %v330
    %v332 = vmul.f32 %v321, 1.442695
    %v333 = vpow.pop %v332
    %v334 = vmul.f32 %v322, 1.442695
    %v335 = vpow.pop %v334
    %v336 = vmul.f32 %v323, 1.442695
    %v337 = vpow.pop %v336
    %v338 = vmul.f32 %v324, 1.442695
    %v339 = vpow.pop %v338
    %v340 = vmul.f32 %v325, 1.442695
    %v341 = vpow.pop %v340
    %v342 = vsel %vm293, %v327, 0.0
    %343 = vadd.xlane.f32.xlu0 %v342
    %v344 = vpop.xlane.xlu0 %343
    %v345 = vsel %vm293, %v329, 0.0
    %346 = vadd.xlane.f32.xlu0 %v345
    %v347 = vpop.xlane.xlu0 %346
    %v348 = vsel %vm293, %v331, 0.0
    %349 = vadd.xlane.f32.xlu0 %v348
    %v350 = vpop.xlane.xlu0 %349
    %v351 = vsel %vm293, %v333, 0.0
    %352 = vadd.xlane.f32.xlu0 %v351
    %v353 = vpop.xlane.xlu0 %352
    %v354 = vsel %vm293, %v335, 0.0
    %355 = vadd.xlane.f32.xlu0 %v354
    %v356 = vpop.xlane.xlu0 %355
    %v357 = vsel %vm293, %v337, 0.0
    %358 = vadd.xlane.f32.xlu0 %v357
    %v359 = vpop.xlane.xlu0 %358
    %v360 = vsel %vm293, %v339, 0.0
    %361 = vadd.xlane.f32.xlu0 %v360
    %v362 = vpop.xlane.xlu0 %361
    %v363 = vsel %vm293, %v341, 0.0
    %364 = vadd.xlane.f32.xlu0 %v363
    %v365 = vpop.xlane.xlu0 %364
    %v366 = vrcp.pop %v344
    %v367 = vrcp.pop %v347
    %v368 = vrcp.pop %v350
    %v369 = vrcp.pop %v353
    %v370 = vrcp.pop %v356
    %v371 = vrcp.pop %v359
    %v372 = vrcp.pop %v362
    %v373 = vrcp.pop %v365
    %v374 = vmul.f32 %v327, %v366
    %v375 = vmul.f32 %v329, %v367
    %v376 = vmul.f32 %v331, %v368
    %v377 = vmul.f32 %v333, %v369
    %v378 = vmul.f32 %v335, %v370
    %v379 = vmul.f32 %v337, %v371
    %v380 = vmul.f32 %v339, %v372
    %v381 = vmul.f32 %v341, %v373
    %v382 = vpack.c.bf16 %v375, %v374
    %v383 = vpack.c.bf16 %v377, %v376
    %v384 = vpack.c.bf16 %v379, %v378
    %v385 = vpack.c.bf16 %v381, %v380
    %v386 = vpack.c.bf16 %v151, %v148
    %388 = vrot.lane.b32.xlu0 %v386, 64
    %v389 = vpop.permute.xlu0 %388
    %v392 = vsel %vm293, %v382, 0
    %v395 = vsel %vm293, %v383, 0
    %v398 = vsel %vm293, %v384, 0
    %v401 = vsel %vm293, %v385, 0
    %403 = vmatprep.subr.bf16.mxu0 0
    %404 = vmatpush1.bf16.msra.mxu0 %v389
    %405 = vmatprep.subr.bf16.mxu0 0
    %406 = vmatpush1.bf16.msra.mxu0 0
    %407 = vmatprep.subr.bf16.mxu0 0
    %408 = vmatpush1.bf16.msra.mxu0 0
    %409 = vmatprep.subr.bf16.mxu0 0
    %410 = vmatpush1.bf16.msra.mxu0 0
    %411 = vmatprep.subr.bf16.mxu0 0
    %412 = vmatpush1.bf16.msra.mxu0 0
    %413 = vmatprep.subr.bf16.mxu0 0
    %414 = vmatpush1.bf16.msra.mxu0 0
    %415 = vmatprep.subr.bf16.mxu0 0
    %416 = vmatpush1.bf16.msra.mxu0 0
    %417 = vmatprep.subr.bf16.mxu0 0
    %418 = vmatpush1.bf16.msra.mxu0 0
    %419 = vmatprep.subr.bf16.mxu0 0
    %420 = vmatpush1.bf16.msra.mxu0 0
    %421 = vmatprep.subr.bf16.mxu0 0
    %422 = vmatpush1.bf16.msra.mxu0 0
    %423 = vmatprep.subr.bf16.mxu0 0
    %424 = vmatpush1.bf16.msra.mxu0 0
    %425 = vmatprep.subr.bf16.mxu0 0
    %426 = vmatpush1.bf16.msra.mxu0 0
    %427 = vmatprep.subr.bf16.mxu0 0
    %428 = vmatpush1.bf16.msra.mxu0 0
    %429 = vmatprep.subr.bf16.mxu0 0
    %430 = vmatpush1.bf16.msra.mxu0 0
    %431 = vmatprep.subr.bf16.mxu0 0
    %432 = vmatpush1.bf16.msra.mxu0 0
    %433 = vmatprep.subr.bf16.mxu0 0
    %434 = vmatpush1.bf16.msra.mxu0 0
    %435 = vmatprep.mubr.bf16.mxu0 0
    %436 = vmatmul.mubr.bf16.gmra.mrb[0].mxu0 %v392
    %v437 = vpop.f32.mrb[0].mxu0
    %v438 = vadd.f32 0.0, %v437
    %v439 = vpop.f32.mrb[0].mxu0
    %v440 = vpop.f32.mrb[0].mxu0
    %v441 = vadd.f32 0.0, %v440
    %v442 = vpop.f32.mrb[0].mxu0
    %443 = vmatprep.mubr.bf16.mxu0 0
    %444 = vmatmul.mubr.bf16.gmra.mrb[0].mxu0 %v395
    %v445 = vpop.f32.mrb[0].mxu0
    %v446 = vadd.f32 0.0, %v445
    %v447 = vpop.f32.mrb[0].mxu0
    %v448 = vpop.f32.mrb[0].mxu0
    %v449 = vadd.f32 0.0, %v448
    %v450 = vpop.f32.mrb[0].mxu0
    %451 = vmatprep.mubr.bf16.mxu0 0
    %452 = vmatmul.mubr.bf16.gmra.mrb[0].mxu0 %v398
    %v453 = vpop.f32.mrb[0].mxu0
    %v454 = vadd.f32 0.0, %v453
    %v455 = vpop.f32.mrb[0].mxu0
    %v456 = vpop.f32.mrb[0].mxu0
    %v457 = vadd.f32 0.0, %v456
    %v458 = vpop.f32.mrb[0].mxu0
    %459 = vmatprep.mubr.bf16.mxu0 0
    %460 = vmatmul.mubr.bf16.gmra.mrb[0].mxu0 %v401
    %v461 = vpop.f32.mrb[0].mxu0
    %v462 = vadd.f32 0.0, %v461
    %v463 = vpop.f32.mrb[0].mxu0
    %v464 = vpop.f32.mrb[0].mxu0
    %v465 = vadd.f32 0.0, %v464
    %v466 = vpop.f32.mrb[0].mxu0
    %467 = vdwg.mxu0
    %v468 = vmul.f32 %v438, %v154
    %v469 = vmul.f32 %v441, %v155
    %v470 = vmul.f32 %v446, %v156
    %v471 = vmul.f32 %v449, %v157
    %v472 = vmul.f32 %v454, %v158
    %v473 = vmul.f32 %v457, %v159
    %v474 = vmul.f32 %v462, %v160
    %v475 = vmul.f32 %v465, %v161
    %v476 = vadd.f32 %v468, %v470
    %v477 = vadd.f32 %v469, %v471
    %v478 = vadd.f32 %v476, %v472
    %v479 = vadd.f32 %v477, %v473
    %v480 = vadd.f32 %v478, %v474
    %v481 = vadd.f32 %v479, %v475
    %v482 = vld [vmem:[#allocation5 + $0x10] sm:$0xf]
    %v483 = vld [vmem:[#allocation5 + $0x14] sm:$0xf]
    %v484 = vld [vmem:[#allocation5 + $0x18] sm:$0xf]
    %v485 = vld [vmem:[#allocation5 + $0x1c] sm:$0xf]
    %v486 = vpack.c.bf16 %v481, %v480
    %v487 = vld [vmem:[#allocation7 + $0x88] sm:$0x1]
    %v488 = vlaneseq
    %v489 = vshrl.u32 %v488, 7
    %v490 = vsub.s32 0, %v489
    %v491 = vrot.slane %v487, %v490
    %v496 = vunpack.c.l.b16 %v482
    %v497 = vunpack.c.l.b16 %v483
    %v498 = vunpack.c.l.b16 %v484
    %v499 = vunpack.c.l.b16 %v485
    %v500 = vpack.c.b16 %v497, %v496
    %v501 = vpack.c.b16 %v499, %v498
    %v505 = vsel %vm109, %v486, 0
    %507 = vmatprep.subr.bf16.mxu0 0
    %508 = vmatpush1.bf16.msra.mxu0 %v500
    %509 = vmatprep.subr.bf16.mxu0 0
    %510 = vmatpush1.bf16.msra.mxu0 %v501
    %511 = vmatprep.subr.bf16.mxu0 0
    %512 = vmatpush1.bf16.msra.mxu0 0
    %513 = vmatprep.subr.bf16.mxu0 0
    %514 = vmatpush1.bf16.msra.mxu0 0
    %515 = vmatprep.subr.bf16.mxu0 0
    %516 = vmatpush1.bf16.msra.mxu0 0
    %517 = vmatprep.subr.bf16.mxu0 0
    %518 = vmatpush1.bf16.msra.mxu0 0
    %519 = vmatprep.subr.bf16.mxu0 0
    %520 = vmatpush1.bf16.msra.mxu0 0
    %521 = vmatprep.subr.bf16.mxu0 0
    %522 = vmatpush1.bf16.msra.mxu0 0
    %523 = vmatprep.subr.bf16.mxu0 0
    %524 = vmatpush1.bf16.msra.mxu0 0
    %525 = vmatprep.subr.bf16.mxu0 0
    %526 = vmatpush1.bf16.msra.mxu0 0
    %527 = vmatprep.subr.bf16.mxu0 0
    %528 = vmatpush1.bf16.msra.mxu0 0
    %529 = vmatprep.subr.bf16.mxu0 0
    %530 = vmatpush1.bf16.msra.mxu0 0
    %531 = vmatprep.subr.bf16.mxu0 0
    %532 = vmatpush1.bf16.msra.mxu0 0
    %533 = vmatprep.subr.bf16.mxu0 0
    %534 = vmatpush1.bf16.msra.mxu0 0
    %535 = vmatprep.subr.bf16.mxu0 0
    %536 = vmatpush1.bf16.msra.mxu0 0
    %537 = vmatprep.subr.bf16.mxu0 0
    %538 = vmatpush1.bf16.msra.mxu0 0
    %539 = vmatprep.mubr.bf16.mxu0 0
    %540 = vmatmul.mubr.bf16.gmra.mrb[0].mxu0 %v505
    %v541 = vpop.f32.mrb[0].mxu0
    %v542 = vadd.f32 %v491, %v541
    %v543 = vpop.f32.mrb[0].mxu0
    %v544 = vpop.f32.mrb[0].mxu0
    %v545 = vadd.f32 %v491, %v544
    %v546 = vpop.f32.mrb[0].mxu0
    %547 = vdwg.mxu0
    %v548 = vadd.f32 %v60, %v542
    %v549 = vadd.f32 %v61, %v545
    %v550 = vld [vmem:[#allocation7 + $0xa0] sm:$0x1]
    %v551 = vld [vmem:[#allocation7 + $0xa8] sm:$0x1]
    %v552 = vsel %vm109, %v548, 0.0
    %553 = vadd.xlane.f32.xlu0 %v552
    %v554 = vpop.xlane.xlu0 %553
    %v555 = vsel %vm109, %v549, 0.0
    %556 = vadd.xlane.f32.xlu0 %v555
    %v557 = vpop.xlane.xlu0 %556
    %v558 = vrcp.pop 32.0
    %v559 = vmul.f32 %v554, %v558
    %v560 = vmul.f32 %v557, %v558
    %v561 = vsub.f32 %v548, %v559
    %v562 = vsub.f32 %v549, %v560
    %v563 = vmul.f32 %v561, %v561
    %v564 = vmul.f32 %v562, %v562
    %v565 = vsel %vm109, %v563, 0.0
    %566 = vadd.xlane.f32.xlu0 %v565
    %v567 = vpop.xlane.xlu0 %566
    %v568 = vsel %vm109, %v564, 0.0
    %569 = vadd.xlane.f32.xlu0 %v568
    %v570 = vpop.xlane.xlu0 %569
    %v571 = vmul.f32 %v567, %v558
    %v572 = vmul.f32 %v570, %v558
    %v573 = vadd.f32 %v571, 1e-06
    %v574 = vadd.f32 %v572, 1e-06
    %v575 = vrsqrt.pop %v573
    %v576 = vrsqrt.pop %v574
    %v577 = vmul.f32 %v561, %v575
    %v578 = vmul.f32 %v562, %v576
    %v579 = vlaneseq
    %v580 = vshrl.u32 %v579, 7
    %v581 = vsub.s32 0, %v580
    %v582 = vrot.slane %v550, %v581
    %v583 = vmul.f32 %v582, %v577
    %v584 = vmul.f32 %v582, %v578
    %v585 = vlaneseq
    %v586 = vshrl.u32 %v585, 7
    %v587 = vsub.s32 0, %v586
    %v588 = vrot.slane %v551, %v587
    %v589 = vadd.f32 %v583, %v588
    %v590 = vadd.f32 %v584, %v588
    %v591 = vld [vmem:[#allocation5 + $0x20] sm:$0xf]
    %v592 = vld [vmem:[#allocation5 + $0x24] sm:$0xf]
    %v593 = vld [vmem:[#allocation5 + $0x28] sm:$0xf]
    %v594 = vld [vmem:[#allocation5 + $0x2c] sm:$0xf]
    %v595 = vld [vmem:[#allocation5 + $0x30] sm:$0xf]
    %v596 = vld [vmem:[#allocation5 + $0x34] sm:$0xf]
    %v597 = vld [vmem:[#allocation5 + $0x38] sm:$0xf]
    %v598 = vld [vmem:[#allocation5 + $0x3c] sm:$0xf]
    %v599 = vld [vmem:[#allocation5 + $0x40] sm:$0xf]
    %v600 = vld [vmem:[#allocation5 + $0x44] sm:$0xf]
    %v601 = vld [vmem:[#allocation5 + $0x48] sm:$0xf]
    %v602 = vld [vmem:[#allocation5 + $0x4c] sm:$0xf]
    %v603 = vpack.c.bf16 %v590, %v589
    %v604 = vld [vmem:[#allocation7 + $0x90] sm:$0x1]
    %v605 = vlaneseq
    %v606 = vshrl.u32 %v605, 7
    %v607 = vsub.s32 0, %v606
    %v608 = vrot.slane %v604, %v607
    %v613 = vunpack.c.l.b16 %v591
    %v614 = vunpack.c.l.b16 %v592
    %v615 = vunpack.c.l.b16 %v593
    %v616 = vunpack.c.l.b16 %v594
    %v617 = vpack.c.b16 %v614, %v613
    %v618 = vpack.c.b16 %v616, %v615
    %v622 = vsel %vm109, %v603, 0
    %624 = vmatprep.subr.bf16.mxu0 0
    %625 = vmatpush1.bf16.msra.mxu0 %v617
    %626 = vmatprep.subr.bf16.mxu0 0
    %627 = vmatpush1.bf16.msra.mxu0 %v618
    %628 = vmatprep.subr.bf16.mxu0 0
    %629 = vmatpush1.bf16.msra.mxu0 0
    %630 = vmatprep.subr.bf16.mxu0 0
    %631 = vmatpush1.bf16.msra.mxu0 0
    %632 = vmatprep.subr.bf16.mxu0 0
    %633 = vmatpush1.bf16.msra.mxu0 0
    %634 = vmatprep.subr.bf16.mxu0 0
    %635 = vmatpush1.bf16.msra.mxu0 0
    %636 = vmatprep.subr.bf16.mxu0 0
    %637 = vmatpush1.bf16.msra.mxu0 0
    %638 = vmatprep.subr.bf16.mxu0 0
    %639 = vmatpush1.bf16.msra.mxu0 0
    %640 = vmatprep.subr.bf16.mxu0 0
    %641 = vmatpush1.bf16.msra.mxu0 0
    %642 = vmatprep.subr.bf16.mxu0 0
    %643 = vmatpush1.bf16.msra.mxu0 0
    %644 = vmatprep.subr.bf16.mxu0 0
    %645 = vmatpush1.bf16.msra.mxu0 0
    %646 = vmatprep.subr.bf16.mxu0 0
    %647 = vmatpush1.bf16.msra.mxu0 0
    %648 = vmatprep.subr.bf16.mxu0 0
    %649 = vmatpush1.bf16.msra.mxu0 0
    %650 = vmatprep.subr.bf16.mxu0 0
    %651 = vmatpush1.bf16.msra.mxu0 0
    %652 = vmatprep.subr.bf16.mxu0 0
    %653 = vmatpush1.bf16.msra.mxu0 0
    %654 = vmatprep.subr.bf16.mxu0 0
    %655 = vmatpush1.bf16.msra.mxu0 0
    %656 = vmatprep.mubr.bf16.mxu0 0
    %657 = vmatmul.mubr.bf16.gmra.mrb[0].mxu0 %v622
    %v658 = vpop.f32.mrb[0].mxu0
    %v659 = vadd.f32 %v608, %v658
    %v660 = vpop.f32.mrb[0].mxu0
    %v661 = vpop.f32.mrb[0].mxu0
    %v662 = vadd.f32 %v608, %v661
    %v663 = vpop.f32.mrb[0].mxu0
    %664 = vdwg.mxu0
    %v665 = vmax.f32 %v659, 0.0
    %v666 = vmax.f32 %v662, 0.0
    %v667 = vpack.c.bf16 %v666, %v665
    %v668 = vld [vmem:[#allocation7 + $0x98] sm:$0x1]
    %v669 = vlaneseq
    %v670 = vshrl.u32 %v669, 7
    %v671 = vsub.s32 0, %v670
    %v672 = vrot.slane %v668, %v671
    %v681 = vunpack.c.l.b16 %v595
    %v682 = vunpack.c.l.b16 %v596
    %v683 = vunpack.c.l.b16 %v597
    %v684 = vunpack.c.l.b16 %v598
    %v685 = vunpack.c.l.b16 %v599
    %v686 = vunpack.c.l.b16 %v600
    %v687 = vunpack.c.l.b16 %v601
    %v688 = vunpack.c.l.b16 %v602
    %v689 = vpack.c.b16 %v682, %v681
    %v690 = vpack.c.b16 %v684, %v683
    %v691 = vpack.c.b16 %v686, %v685
    %v692 = vpack.c.b16 %v688, %v687
    %vm697 = vcmask 523264
    %v699 = vsel %vm697, %v667, 0
    %701 = vmatprep.subr.bf16.mxu0 0
    %702 = vmatpush1.bf16.msra.mxu0 %v689
    %703 = vmatprep.subr.bf16.mxu0 0
    %704 = vmatpush1.bf16.msra.mxu0 %v690
    %705 = vmatprep.subr.bf16.mxu0 0
    %706 = vmatpush1.bf16.msra.mxu0 %v691
    %707 = vmatprep.subr.bf16.mxu0 0
    %708 = vmatpush1.bf16.msra.mxu0 %v692
    %709 = vmatprep.subr.bf16.mxu0 0
    %710 = vmatpush1.bf16.msra.mxu0 0
    %711 = vmatprep.subr.bf16.mxu0 0
    %712 = vmatpush1.bf16.msra.mxu0 0
    %713 = vmatprep.subr.bf16.mxu0 0
    %714 = vmatpush1.bf16.msra.mxu0 0
    %715 = vmatprep.subr.bf16.mxu0 0
    %716 = vmatpush1.bf16.msra.mxu0 0
    %717 = vmatprep.subr.bf16.mxu0 0
    %718 = vmatpush1.bf16.msra.mxu0 0
    %719 = vmatprep.subr.bf16.mxu0 0
    %720 = vmatpush1.bf16.msra.mxu0 0
    %721 = vmatprep.subr.bf16.mxu0 0
    %722 = vmatpush1.bf16.msra.mxu0 0
    %723 = vmatprep.subr.bf16.mxu0 0
    %724 = vmatpush1.bf16.msra.mxu0 0
    %725 = vmatprep.subr.bf16.mxu0 0
    %726 = vmatpush1.bf16.msra.mxu0 0
    %727 = vmatprep.subr.bf16.mxu0 0
    %728 = vmatpush1.bf16.msra.mxu0 0
    %729 = vmatprep.subr.bf16.mxu0 0
    %730 = vmatpush1.bf16.msra.mxu0 0
    %731 = vmatprep.subr.bf16.mxu0 0
    %732 = vmatpush1.bf16.msra.mxu0 0
    %733 = vmatprep.mubr.bf16.mxu0 0
    %734 = vmatmul.mubr.bf16.gmra.mrb[0].mxu0 %v699
    %v735 = vpop.f32.mrb[0].mxu0
    %v736 = vadd.f32 %v672, %v735
    %v737 = vpop.f32.mrb[0].mxu0
    %v738 = vpop.f32.mrb[0].mxu0
    %v739 = vadd.f32 %v672, %v738
    %v740 = vpop.f32.mrb[0].mxu0
    %741 = vdwg.mxu0
    %v742 = vadd.f32 %v589, %v736
    %v743 = vadd.f32 %v590, %v739
    %v744 = vld [vmem:[#allocation7 + $0xb0] sm:$0x1]
    %v745 = vld [vmem:[#allocation7 + $0xb8] sm:$0x1]
    %v746 = vsel %vm109, %v742, 0.0
    %747 = vadd.xlane.f32.xlu0 %v746
    %v748 = vpop.xlane.xlu0 %747
    %v749 = vsel %vm109, %v743, 0.0
    %750 = vadd.xlane.f32.xlu0 %v749
    %v751 = vpop.xlane.xlu0 %750
    %v752 = vmul.f32 %v748, %v558
    %v753 = vmul.f32 %v751, %v558
    %v754 = vsub.f32 %v742, %v752
    %v755 = vsub.f32 %v743, %v753
    %v756 = vmul.f32 %v754, %v754
    %v757 = vmul.f32 %v755, %v755
    %v758 = vsel %vm109, %v756, 0.0
    %759 = vadd.xlane.f32.xlu0 %v758
    %v760 = vpop.xlane.xlu0 %759
    %v761 = vsel %vm109, %v757, 0.0
    %762 = vadd.xlane.f32.xlu0 %v761
    %v763 = vpop.xlane.xlu0 %762
    %v764 = vmul.f32 %v760, %v558
    %v765 = vmul.f32 %v763, %v558
    %v766 = vadd.f32 %v764, 1e-06
    %v767 = vadd.f32 %v765, 1e-06
    %v768 = vrsqrt.pop %v766
    %v769 = vrsqrt.pop %v767
    %v770 = vmul.f32 %v754, %v768
    %v771 = vmul.f32 %v755, %v769
    %v772 = vlaneseq
    %v773 = vshrl.u32 %v772, 7
    %v774 = vsub.s32 0, %v773
    %v775 = vrot.slane %v744, %v774
    %v776 = vmul.f32 %v775, %v770
    %v777 = vmul.f32 %v775, %v771
    %v778 = vlaneseq
    %v779 = vshrl.u32 %v778, 7
    %v780 = vsub.s32 0, %v779
    %v781 = vrot.slane %v745, %v780
    %v782 = vadd.f32 %v776, %v781
    %v783 = vadd.f32 %v777, %v781
    %784 = vst.msk [vmem:[#allocation8] sm:$0xff] %vm109, %v782
    %785 = vst.msk [vmem:[#allocation8 + $0x8] sm:$0xff] %vm109, %v783
    // Predicated region
    $region30: #{tpu_custom_call.1} parent=1 // pred_check
      _
    $region31: #{tpu_custom_call.1} parent=1 // pred_check_branch
      %787 = sbr.rel (0) target = $region33
    $region32: #{tpu_custom_call.1} parent=1 // pred_region
      %s789 = ssub.s32 256, 256
      %790 = vsyncadd [#allocation4], %s789
      %s791 = sshll.u32 [#allocation8], 4
      %s792 = int_to_ptr.vmem [resolvable:$true] %s791
      %797 = dma.vmem_to_hbm [thread:$0]  %s792, 256, %s4, [#allocation4], 128, 128, 8
    $region33: #{tpu_custom_call.1} parent=1 // pred_fallthru
      _
    // Predicated region
    $region34: #{tpu_custom_call.1} parent=1 // pred_check
      _
    $region35: #{tpu_custom_call.1} parent=1 // pred_check_branch
      %799 = sbr.rel (0) target = $region37
    $region36: #{tpu_custom_call.1} parent=1 // pred_region
      %800 = dma.done [#allocation4], 256
    $region37: #{tpu_custom_call.1} parent=1 // pred_fallthru
      _
    %801 = vsyncpa [#allocation3], 1
    %802 = vsyncpa [#allocation6], 1
    %803 = vsyncpa [#allocation4], 1

</llo_original>
